<compile_context>
chip_gen: v5e
topology: v5e:2x2
jax: 0.10.0
libtpu: 0.0.40
codegen_flags: <defaults>
</compile_context>

<pallas_src>
import functools

import numpy as np
import jax
import jax.numpy as jnp
from jax.experimental import pallas as pl
from jax.experimental.pallas import tpu as pltpu


def _model_kernel(x_ref, w0_ref, b0_ref, wf_ref, bf_ref, o_ref):
    x = x_ref[...]                                   # (3, tile_p), pixels on lanes

    # self.conv : 1x1 conv (3 -> 8); spatial padding=1 handled by the wrapper.
    y0 = jnp.dot(w0_ref[...], x,
                 preferred_element_type=jnp.float32) + b0_ref[...]   # (8, tile_p)

    # ---- simplified elementwise chain (same semantics as the torch forward) ----
    v1 = y0 + 3.0                                    # v1 (== v3,v4,v6,v7,v8,v17)
    inv_v1 = pl.reciprocal(v1, approx=True)          # EUP
    inv_v5 = pl.reciprocal(1.0 - v1, approx=True)    # v15 = 1/(1 - v1), EUP
    v16 = (v1 - 1.0) * inv_v5                        # == -1, NaN at y0 == -2 (kept)
    six_over_v1 = 6.0 * inv_v1                       # v19 == v20
    v23 = jnp.minimum(six_over_v1, 6.0) * jnp.maximum(six_over_v1, 0.0)
    v31 = jnp.maximum(-six_over_v1, 0.0)             # clamp_min(6/(-v1), 0)
    v18 = v1 + 3.0                                   # == v29
    x2 = 6.0 * v18 * (v16 * v23 + v31)               # v28 + v33
    v35 = 3.0 * pl.reciprocal(x2, approx=True)

    # ---- other_conv1..other_conv7 folded into one 8x8 affine map ----
    o_ref[...] = jnp.dot(wf_ref[...], v35,
                         preferred_element_type=jnp.float32) + bf_ref[...]


@functools.partial(jax.jit, static_argnames=("tile_p",))
def model_forward(x_nchw, folded_params, tile_p=512):
    """x_nchw: (N, 3, H, W) float32. Returns (N, 8, H+2, W+2)."""
    w0, b0, wf, bf = folded_params
    N, C, H, W = x_nchw.shape
    Hp, Wp = H + 2, W + 2                    # padding=1 of the first (1x1) conv

    # Spatial zero-pad in NCHW; NCHW is already channel-major so no transpose
    # is needed for N == 1 (and only a cheap (1,0) swap otherwise).
    xp = jnp.pad(x_nchw, ((0, 0), (0, 0), (1, 1), (1, 1)))
    P = N * Hp * Wp
    if N == 1:
        x_pix = xp.reshape(C, P)
    else:
        x_pix = jnp.transpose(xp, (1, 0, 2, 3)).reshape(C, P)

    P_pad = pl.cdiv(P, tile_p) * tile_p
    x_pix = jnp.pad(x_pix, ((0, 0), (0, P_pad - P)))

    grid = (P_pad // tile_p,)
    out = pl.pallas_call(
        _model_kernel,
        out_shape=jax.ShapeDtypeStruct((8, P_pad), jnp.float32),
        grid_spec=pltpu.PrefetchScalarGridSpec(
            num_scalar_prefetch=0,
            grid=grid,
            in_specs=[
                pl.BlockSpec((C, tile_p), lambda i: (0, i)),   # pixels on lanes
                pl.BlockSpec(w0.shape, lambda i: (0, 0)),      # (8, 3) resident
                pl.BlockSpec(b0.shape, lambda i: (0, 0)),      # (8, 1)
                pl.BlockSpec(wf.shape, lambda i: (0, 0)),      # (8, 8) folded
                pl.BlockSpec(bf.shape, lambda i: (0, 0)),      # (8, 1) folded
            ],
            out_specs=pl.BlockSpec((8, tile_p), lambda i: (0, i)),
        ),
        compiler_params=pltpu.CompilerParams(
            dimension_semantics=("parallel",)),
    )(x_pix, w0, b0, wf, bf)

    out = out[:, :P]
    if N == 1:
        return out.reshape(1, 8, Hp, Wp)
    return jnp.transpose(out.reshape(8, N, Hp, Wp), (1, 0, 2, 3))


def init_params(key):
    """Deterministic params mimicking torch Conv2d(k=1) init.
    Weights stored as (Cout, Cin), biases as (Cout, 1)."""
    dims = [(3, 8), (8, 16), (16, 32), (32, 16), (16, 8), (8, 8), (8, 8), (8, 8)]
    params = []
    for cin, cout in dims:
        key, kw, kb = jax.random.split(key, 3)
        bound = 1.0 / jnp.sqrt(float(cin))
        w = jax.random.uniform(kw, (cout, cin), jnp.float32, -bound, bound)
        b = jax.random.uniform(kb, (cout, 1), jnp.float32, -bound, bound)
        params += [w, b]
    return tuple(params)


def fold_params(params):
    """Fold other_conv1..other_conv7 (all 1x1, no nonlinearity between them)
    into one 8x8 affine map. Done on host in float64 for accuracy."""
    w0 = jnp.asarray(params[0], jnp.float32)
    b0 = jnp.asarray(params[1], jnp.float32)
    W = np.asarray(params[2], np.float64)       # (16, 8)
    b = np.asarray(params[3], np.float64)       # (16, 1)
    for i in range(4, 16, 2):
        Wi = np.asarray(params[i], np.float64)
        bi = np.asarray(params[i + 1], np.float64)
        W = Wi @ W
        b = Wi @ b + bi
    return (w0, b0,
            jnp.asarray(W, dtype=jnp.float32),  # (8, 8)
            jnp.asarray(b, dtype=jnp.float32))  # (8, 1)


if __name__ == "__main__":
    key = jax.random.PRNGKey(0)
    k_x, k_p = jax.random.split(key)

    # small shape consistent with the module: N=1, C=3, 16x16 spatial
    x = jax.random.normal(k_x, (1, 3, 16, 16), jnp.float32)
    params = init_params(k_p)
    folded = fold_params(params)

    out = model_forward(x, folded)
    jax.block_until_ready(out)
    assert out.shape == (1, 8, 18, 18), out.shape
    print("KERNEL_OK")
</pallas_src>

<mosaic_0001>
module attributes {stable_mosaic.version = 11 : i64} {
  func.func @_model_kernel(%arg0: i32, %arg1: memref<3x512xf32, #tpu.memory_space<vmem>>, %arg2: memref<8x3xf32, #tpu.memory_space<vmem>>, %arg3: memref<8x1xf32, #tpu.memory_space<vmem>>, %arg4: memref<8x8xf32, #tpu.memory_space<vmem>>, %arg5: memref<8x1xf32, #tpu.memory_space<vmem>>, %arg6: memref<8x512xf32, #tpu.memory_space<vmem>>) attributes {dimension_semantics = [#tpu.dimension_semantics<parallel>], iteration_bounds = array<i64: 1>, scalar_prefetch = 0 : i64, scratch_operands = 0 : i64, tpu.core_type = #tpu.core_type<tc>, window_params = [{transform_indices = @transform_0, window_bounds = array<i64: 3, 512>}, {pipeline_mode = #tpu.pipeline_mode<synchronous>, transform_indices = @transform_1, window_bounds = array<i64: 8, 3>}, {pipeline_mode = #tpu.pipeline_mode<synchronous>, transform_indices = @transform_2, window_bounds = array<i64: 8, 1>}, {pipeline_mode = #tpu.pipeline_mode<synchronous>, transform_indices = @transform_3, window_bounds = array<i64: 8, 8>}, {pipeline_mode = #tpu.pipeline_mode<synchronous>, transform_indices = @transform_4, window_bounds = array<i64: 8, 1>}, {transform_indices = @transform_5, window_bounds = array<i64: 8, 512>}]} {
    %c0 = arith.constant 0 : index
    %c0_0 = arith.constant 0 : index
    %0 = vector.load %arg1[%c0, %c0_0] : memref<3x512xf32, #tpu.memory_space<vmem>>, vector<3x512xf32>
    %c0_1 = arith.constant 0 : index
    %c0_2 = arith.constant 0 : index
    %1 = vector.load %arg2[%c0_1, %c0_2] : memref<8x3xf32, #tpu.memory_space<vmem>>, vector<8x3xf32>
    %cst = arith.constant dense<0.000000e+00> : vector<8x512xf32>
    %2 = tpu.matmul %1, %0, %cst {dimension_numbers = #tpu.dot_dimension_numbers<[1], [0], [0], [1], [0, 0, 1, 1], [], []>} : vector<8x3xf32>, vector<3x512xf32>, vector<8x512xf32> -> vector<8x512xf32>
    %c0_3 = arith.constant 0 : index
    %c0_4 = arith.constant 0 : index
    %3 = vector.load %arg3[%c0_3, %c0_4] : memref<8x1xf32, #tpu.memory_space<vmem>>, vector<8x1xf32>
    %4 = vector.broadcast %3 : vector<8x1xf32> to vector<8x512xf32>
    %5 = arith.addf %2, %4 : vector<8x512xf32>
    %cst_5 = arith.constant 3.000000e+00 : f32
    %6 = vector.broadcast %cst_5 : f32 to vector<8x512xf32>
    %7 = arith.addf %5, %6 : vector<8x512xf32>
    %8 = tpu.reciprocal %7 {approx = true} : vector<8x512xf32> -> vector<8x512xf32>
    %cst_6 = arith.constant 1.000000e+00 : f32
    %9 = vector.broadcast %cst_6 : f32 to vector<8x512xf32>
    %10 = arith.subf %9, %7 : vector<8x512xf32>
    %11 = tpu.reciprocal %10 {approx = true} : vector<8x512xf32> -> vector<8x512xf32>
    %cst_7 = arith.constant 1.000000e+00 : f32
    %12 = vector.broadcast %cst_7 : f32 to vector<8x512xf32>
    %13 = arith.subf %7, %12 : vector<8x512xf32>
    %14 = arith.mulf %13, %11 : vector<8x512xf32>
    %cst_8 = arith.constant 6.000000e+00 : f32
    %15 = vector.broadcast %cst_8 : f32 to vector<8x512xf32>
    %16 = arith.mulf %15, %8 : vector<8x512xf32>
    %cst_9 = arith.constant 6.000000e+00 : f32
    %17 = vector.broadcast %cst_9 : f32 to vector<8x512xf32>
    %18 = arith.minimumf %16, %17 : vector<8x512xf32>
    %cst_10 = arith.constant 0.000000e+00 : f32
    %19 = vector.broadcast %cst_10 : f32 to vector<8x512xf32>
    %20 = arith.maximumf %16, %19 : vector<8x512xf32>
    %21 = arith.mulf %18, %20 : vector<8x512xf32>
    %cst_11 = arith.constant 0.000000e+00 : f32
    %22 = vector.broadcast %cst_11 : f32 to vector<8x512xf32>
    %23 = arith.subf %22, %16 : vector<8x512xf32>
    %cst_12 = arith.constant 0.000000e+00 : f32
    %24 = vector.broadcast %cst_12 : f32 to vector<8x512xf32>
    %25 = arith.maximumf %23, %24 : vector<8x512xf32>
    %cst_13 = arith.constant 3.000000e+00 : f32
    %26 = vector.broadcast %cst_13 : f32 to vector<8x512xf32>
    %27 = arith.addf %7, %26 : vector<8x512xf32>
    %cst_14 = arith.constant 6.000000e+00 : f32
    %28 = vector.broadcast %cst_14 : f32 to vector<8x512xf32>
    %29 = arith.mulf %28, %27 : vector<8x512xf32>
    %30 = arith.mulf %14, %21 : vector<8x512xf32>
    %31 = arith.addf %30, %25 : vector<8x512xf32>
    %32 = arith.mulf %29, %31 : vector<8x512xf32>
    %33 = tpu.reciprocal %32 {approx = true} : vector<8x512xf32> -> vector<8x512xf32>
    %cst_15 = arith.constant 3.000000e+00 : f32
    %34 = vector.broadcast %cst_15 : f32 to vector<8x512xf32>
    %35 = arith.mulf %34, %33 : vector<8x512xf32>
    %c0_16 = arith.constant 0 : index
    %c0_17 = arith.constant 0 : index
    %36 = vector.load %arg4[%c0_16, %c0_17] : memref<8x8xf32, #tpu.memory_space<vmem>>, vector<8x8xf32>
    %cst_18 = arith.constant dense<0.000000e+00> : vector<8x512xf32>
    %37 = tpu.matmul %36, %35, %cst_18 {dimension_numbers = #tpu.dot_dimension_numbers<[1], [0], [0], [1], [0, 0, 1, 1], [], []>} : vector<8x8xf32>, vector<8x512xf32>, vector<8x512xf32> -> vector<8x512xf32>
    %c0_19 = arith.constant 0 : index
    %c0_20 = arith.constant 0 : index
    %38 = vector.load %arg5[%c0_19, %c0_20] : memref<8x1xf32, #tpu.memory_space<vmem>>, vector<8x1xf32>
    %39 = vector.broadcast %38 : vector<8x1xf32> to vector<8x512xf32>
    %40 = arith.addf %37, %39 : vector<8x512xf32>
    %c0_21 = arith.constant 0 : index
    %c0_22 = arith.constant 0 : index
    %41 = vector.load %arg6[%c0_21, %c0_22] : memref<8x512xf32, #tpu.memory_space<vmem>>, vector<8x512xf32>
    tpu.vector_store %arg6[%c0_21, %c0_22], %40 {strides = array<i32>} : memref<8x512xf32, #tpu.memory_space<vmem>>, vector<8x512xf32>,
    return
  }
  func.func @transform_0(%arg0: i32) -> (i32, i32) {
    %c0_i32 = arith.constant 0 : i32
    %c0_i32_0 = arith.constant 0 : i32
    return %c0_i32, %arg0 : i32, i32
  }
  func.func @transform_1(%arg0: i32) -> (i32, i32) {
    %c0_i32 = arith.constant 0 : i32
    %c0_i32_0 = arith.constant 0 : i32
    %c0_i32_1 = arith.constant 0 : i32
    return %c0_i32, %c0_i32_0 : i32, i32
  }
  func.func @transform_2(%arg0: i32) -> (i32, i32) {
    %c0_i32 = arith.constant 0 : i32
    %c0_i32_0 = arith.constant 0 : i32
    %c0_i32_1 = arith.constant 0 : i32
    return %c0_i32, %c0_i32_0 : i32, i32
  }
  func.func @transform_3(%arg0: i32) -> (i32, i32) {
    %c0_i32 = arith.constant 0 : i32
    %c0_i32_0 = arith.constant 0 : i32
    %c0_i32_1 = arith.constant 0 : i32
    return %c0_i32, %c0_i32_0 : i32, i32
  }
  func.func @transform_4(%arg0: i32) -> (i32, i32) {
    %c0_i32 = arith.constant 0 : i32
    %c0_i32_0 = arith.constant 0 : i32
    %c0_i32_1 = arith.constant 0 : i32
    return %c0_i32, %c0_i32_0 : i32, i32
  }
  func.func @transform_5(%arg0: i32) -> (i32, i32) {
    %c0_i32 = arith.constant 0 : i32
    %c0_i32_0 = arith.constant 0 : i32
    return %c0_i32, %arg0 : i32, i32
  }
}

</mosaic_0001>

<llo_original>
// kernel: model_forward.1
$region0: #{model_forward.1}
  #allocation0 [shape = 'u32[]', space=smem, size = 0x4, offset = 0x4, fixed_abs, tag = 'smem constant byte address 0x4 - core index']
  #allocation1 [shape = 'u32[72,128]{1,0:T(1,128)}', space=vmem, size = 0x9000, scoped, tag = 'internal scratch']
  %s0 = inlined_call_operand.vmem [shape: f32[3,512], index: 0, kind: input, shape index: {}]
  %s1 = inlined_call_operand.vmem [shape: f32[8,3], index: 1, kind: input, shape index: {}]
  %s2 = inlined_call_operand.vmem [shape: f32[8,1], index: 2, kind: input, shape index: {}]
  %s3 = inlined_call_operand.vmem [shape: f32[8,8], index: 3, kind: input, shape index: {}]
  %s4 = inlined_call_operand.vmem [shape: f32[8,1], index: 4, kind: input, shape index: {}]
  %s5 = inlined_call_operand.vmem [shape: f32[8,512], index: 5, kind: output, shape index: {}]
  %s6 = sld [smem:[#allocation0]]
  $region30: #{model_forward.1} parent=0
    _
  %s8 = ssub.s32 1, %s6
  %s9 = scalar_select 0, %s8, %s6
  // Predicated region
  $region2: #{model_forward.1} parent=0 // pred_check
    _
  $region3: #{model_forward.1} parent=0 // pred_check_branch
    %11 = sbr.rel (0) target = $region5
  $region4: #{model_forward.1} parent=0 // pred_region
    _
  $region5: #{model_forward.1} parent=0 // pred_fallthru
    _
  // Predicated region
  $region6: #{model_forward.1} parent=0 // pred_check
    _
  $region7: #{model_forward.1} parent=0 // pred_check_branch
    %13 = sbr.rel (0) target = $region9
  $region8: #{model_forward.1} parent=0 // pred_region
    _
  $region9: #{model_forward.1} parent=0 // pred_fallthru
    _
  // Predicated region
  $region10: #{model_forward.1} parent=0 // pred_check
    _
  $region11: #{model_forward.1} parent=0 // pred_check_branch
    %15 = sbr.rel (0) target = $region13
  $region12: #{model_forward.1} parent=0 // pred_region
    _
  $region13: #{model_forward.1} parent=0 // pred_fallthru
    _
  // Predicated region
  $region14: #{model_forward.1} parent=0 // pred_check
    _
  $region15: #{model_forward.1} parent=0 // pred_check_branch
    %17 = sbr.rel (0) target = $region17
  $region16: #{model_forward.1} parent=0 // pred_region
    _
  $region17: #{model_forward.1} parent=0 // pred_fallthru
    _
  // Predicated region
  $region18: #{model_forward.1} parent=0 // pred_check
    _
  $region19: #{model_forward.1} parent=0 // pred_check_branch
    %19 = sbr.rel (0) target = $region21
  $region20: #{model_forward.1} parent=0 // pred_region
    _
  $region21: #{model_forward.1} parent=0 // pred_fallthru
    _
  %v20 = vld [vmem:[%s0] sm:$0x77]
  %v21 = vld [vmem:[%s0 + $0x8] sm:$0x77]
  %v22 = vld [vmem:[%s1] sm:$0xff]
  %v23 = vld [vmem:[%s2] sm:$0xff]
  %25 = vset.pattern.permute.xlu0 0
  %26 = vperm.xlu0 %25, %v23
  %v27 = vpop.permute.xlu0 %26
  %31 = vst [vmem:[#allocation1] ss:$2 sm:$0xff] %v20
  %s32 = scalar_lea.vmem [#allocation1], 16
  %33 = vst [vmem:[%s32] ss:$2 sm:$0xff] %v21
  %v34 = vld.sshfl [vmem:[#allocation1] sm:$0xff pattern:$0x75316420]
  %v35 = vld.sshfl [vmem:[#allocation1 + $0x8] sm:$0xff pattern:$0x75316420]
  %v36 = vld.sshfl [vmem:[#allocation1 + $0x10] sm:$0xff pattern:$0x75316420]
  %v37 = vld.sshfl [vmem:[#allocation1 + $0x18] sm:$0xff pattern:$0x75316420]
  %vm38 = vcmask 23552
  %v40 = vsel %vm38, %v22, 0
  %vm42 = vcmask 1042432
  %v43 = vsel %vm42, %v34, 0
  %v45 = vsel %vm42, %v35, 0
  %v47 = vsel %vm42, %v36, 0
  %v49 = vsel %vm42, %v37, 0
  %51 = vmatpush.msra.mxu0 0.0
  %52 = vmatpush.msra.mxu0 0.0
  %53 = vmatpush.msra.mxu0 0.0
  %54 = vmatpush.msra.mxu0 0.0
  %55 = vmatpush.msra.mxu0 0.0
  %56 = vmatpush.msra.mxu0 0.0
  %57 = vmatpush.msra.mxu0 0.0
  %58 = vmatpush.msra.mxu0 0.0
  %59 = vmatpush.msra.mxu0 0.0
  %60 = vmatpush.msra.mxu0 0.0
  %61 = vmatpush.msra.mxu0 0.0
  %62 = vmatpush.msra.mxu0 0.0
  %63 = vmatpush.msra.mxu0 0.0
  %64 = vmatpush.msra.mxu0 0.0
  %65 = vmatpush.msra.mxu0 0.0
  %66 = vmatpush.msra.mxu0 %v43
  %67 = vmatmul.f32.gmra.mxu0 %v40
  %v68 = vpop.f32.mrf.mxu0
  %v69 = vadd.f32 %v27, %v68
  %70 = vdwg.mxu0
  %71 = vmatpush.msra.mxu0 0.0
  %72 = vmatpush.msra.mxu0 0.0
  %73 = vmatpush.msra.mxu0 0.0
  %74 = vmatpush.msra.mxu0 0.0
  %75 = vmatpush.msra.mxu0 0.0
  %76 = vmatpush.msra.mxu0 0.0
  %77 = vmatpush.msra.mxu0 0.0
  %78 = vmatpush.msra.mxu0 0.0
  %79 = vmatpush.msra.mxu0 0.0
  %80 = vmatpush.msra.mxu0 0.0
  %81 = vmatpush.msra.mxu0 0.0
  %82 = vmatpush.msra.mxu0 0.0
  %83 = vmatpush.msra.mxu0 0.0
  %84 = vmatpush.msra.mxu0 0.0
  %85 = vmatpush.msra.mxu0 0.0
  %86 = vmatpush.msra.mxu0 %v45
  %87 = vmatmul.f32.gmra.mxu0 %v40
  %v88 = vpop.f32.mrf.mxu0
  %v89 = vadd.f32 %v27, %v88
  %90 = vdwg.mxu0
  %91 = vmatpush.msra.mxu0 0.0
  %92 = vmatpush.msra.mxu0 0.0
  %93 = vmatpush.msra.mxu0 0.0
  %94 = vmatpush.msra.mxu0 0.0
  %95 = vmatpush.msra.mxu0 0.0
  %96 = vmatpush.msra.mxu0 0.0
  %97 = vmatpush.msra.mxu0 0.0
  %98 = vmatpush.msra.mxu0 0.0
  %99 = vmatpush.msra.mxu0 0.0
  %100 = vmatpush.msra.mxu0 0.0
  %101 = vmatpush.msra.mxu0 0.0
  %102 = vmatpush.msra.mxu0 0.0
  %103 = vmatpush.msra.mxu0 0.0
  %104 = vmatpush.msra.mxu0 0.0
  %105 = vmatpush.msra.mxu0 0.0
  %106 = vmatpush.msra.mxu0 %v47
  %107 = vmatmul.f32.gmra.mxu0 %v40
  %v108 = vpop.f32.mrf.mxu0
  %v109 = vadd.f32 %v27, %v108
  %110 = vdwg.mxu0
  %111 = vmatpush.msra.mxu0 0.0
  %112 = vmatpush.msra.mxu0 0.0
  %113 = vmatpush.msra.mxu0 0.0
  %114 = vmatpush.msra.mxu0 0.0
  %115 = vmatpush.msra.mxu0 0.0
  %116 = vmatpush.msra.mxu0 0.0
  %117 = vmatpush.msra.mxu0 0.0
  %118 = vmatpush.msra.mxu0 0.0
  %119 = vmatpush.msra.mxu0 0.0
  %120 = vmatpush.msra.mxu0 0.0
  %121 = vmatpush.msra.mxu0 0.0
  %122 = vmatpush.msra.mxu0 0.0
  %123 = vmatpush.msra.mxu0 0.0
  %124 = vmatpush.msra.mxu0 0.0
  %125 = vmatpush.msra.mxu0 0.0
  %126 = vmatpush.msra.mxu0 %v49
  %127 = vmatmul.f32.gmra.mxu0 %v40
  %v128 = vpop.f32.mrf.mxu0
  %v129 = vadd.f32 %v27, %v128
  %130 = vdwg.mxu0
  %v131 = vadd.f32 %v69, 3.0
  %v132 = vadd.f32 %v89, 3.0
  %v133 = vadd.f32 %v109, 3.0
  %v134 = vadd.f32 %v129, 3.0
  %v135 = vrcp.pop %v131
  %v136 = vrcp.pop %v132
  %v137 = vrcp.pop %v133
  %v138 = vrcp.pop %v134
  %v139 = vsub.f32 1.0, %v131
  %v140 = vsub.f32 1.0, %v132
  %v141 = vsub.f32 1.0, %v133
  %v142 = vsub.f32 1.0, %v134
  %v143 = vrcp.pop %v139
  %v144 = vrcp.pop %v140
  %v145 = vrcp.pop %v141
  %v146 = vrcp.pop %v142
  %v147 = vsub.f32 %v131, 1.0
  %v148 = vsub.f32 %v132, 1.0
  %v149 = vsub.f32 %v133, 1.0
  %v150 = vsub.f32 %v134, 1.0
  %v151 = vmul.f32 %v147, %v143
  %v152 = vmul.f32 %v148, %v144
  %v153 = vmul.f32 %v149, %v145
  %v154 = vmul.f32 %v150, %v146
  %v155 = vmul.f32 %v135, 6.0
  %v156 = vmul.f32 %v136, 6.0
  %v157 = vmul.f32 %v137, 6.0
  %v158 = vmul.f32 %v138, 6.0
  %v159 = vmin.f32 %v155, 6.0
  %v160 = vmin.f32 %v156, 6.0
  %v161 = vmin.f32 %v157, 6.0
  %v162 = vmin.f32 %v158, 6.0
  %v163 = vmax.f32 %v155, 0.0
  %v164 = vmax.f32 %v156, 0.0
  %v165 = vmax.f32 %v157, 0.0
  %v166 = vmax.f32 %v158, 0.0
  %v167 = vmul.f32 %v159, %v163
  %v168 = vmul.f32 %v160, %v164
  %v169 = vmul.f32 %v161, %v165
  %v170 = vmul.f32 %v162, %v166
  %v171 = vsub.f32 0.0, %v155
  %v172 = vsub.f32 0.0, %v156
  %v173 = vsub.f32 0.0, %v157
  %v174 = vsub.f32 0.0, %v158
  %v175 = vmax.f32 %v171, 0.0
  %v176 = vmax.f32 %v172, 0.0
  %v177 = vmax.f32 %v173, 0.0
  %v178 = vmax.f32 %v174, 0.0
  %v179 = vadd.f32 %v131, 3.0
  %v180 = vadd.f32 %v132, 3.0
  %v181 = vadd.f32 %v133, 3.0
  %v182 = vadd.f32 %v134, 3.0
  %v183 = vmul.f32 %v179, 6.0
  %v184 = vmul.f32 %v180, 6.0
  %v185 = vmul.f32 %v181, 6.0
  %v186 = vmul.f32 %v182, 6.0
  %v187 = vmul.f32 %v151, %v167
  %v188 = vmul.f32 %v152, %v168
  %v189 = vmul.f32 %v153, %v169
  %v190 = vmul.f32 %v154, %v170
  %v191 = vadd.f32 %v187, %v175
  %v192 = vadd.f32 %v188, %v176
  %v193 = vadd.f32 %v189, %v177
  %v194 = vadd.f32 %v190, %v178
  %v195 = vmul.f32 %v183, %v191
  %v196 = vmul.f32 %v184, %v192
  %v197 = vmul.f32 %v185, %v193
  %v198 = vmul.f32 %v186, %v194
  %v199 = vrcp.pop %v195
  %v200 = vrcp.pop %v196
  %v201 = vrcp.pop %v197
  %v202 = vrcp.pop %v198
  %v203 = vmul.f32 %v199, 3.0
  %v204 = vmul.f32 %v200, 3.0
  %v205 = vmul.f32 %v201, 3.0
  %v206 = vmul.f32 %v202, 3.0
  %v207 = vld [vmem:[%s3] sm:$0xff]
  %v208 = vld [vmem:[%s4] sm:$0xff]
  %210 = vset.pattern.permute.xlu0 0
  %211 = vperm.xlu0 %210, %v208
  %v212 = vpop.permute.xlu0 %211
  %vm214 = vcmask 64512
  %v216 = vsel %vm214, %v207, 0
  %218 = vmatpush.msra.mxu0 0.0
  %219 = vmatpush.msra.mxu0 0.0
  %220 = vmatpush.msra.mxu0 0.0
  %221 = vmatpush.msra.mxu0 0.0
  %222 = vmatpush.msra.mxu0 0.0
  %223 = vmatpush.msra.mxu0 0.0
  %224 = vmatpush.msra.mxu0 0.0
  %225 = vmatpush.msra.mxu0 0.0
  %226 = vmatpush.msra.mxu0 0.0
  %227 = vmatpush.msra.mxu0 0.0
  %228 = vmatpush.msra.mxu0 0.0
  %229 = vmatpush.msra.mxu0 0.0
  %230 = vmatpush.msra.mxu0 0.0
  %231 = vmatpush.msra.mxu0 0.0
  %232 = vmatpush.msra.mxu0 0.0
  %233 = vmatpush.msra.mxu0 %v203
  %234 = vmatmul.f32.gmra.mxu0 %v216
  %v235 = vpop.f32.mrf.mxu0
  %v236 = vadd.f32 %v212, %v235
  %237 = vdwg.mxu0
  %238 = vmatpush.msra.mxu0 0.0
  %239 = vmatpush.msra.mxu0 0.0
  %240 = vmatpush.msra.mxu0 0.0
  %241 = vmatpush.msra.mxu0 0.0
  %242 = vmatpush.msra.mxu0 0.0
  %243 = vmatpush.msra.mxu0 0.0
  %244 = vmatpush.msra.mxu0 0.0
  %245 = vmatpush.msra.mxu0 0.0
  %246 = vmatpush.msra.mxu0 0.0
  %247 = vmatpush.msra.mxu0 0.0
  %248 = vmatpush.msra.mxu0 0.0
  %249 = vmatpush.msra.mxu0 0.0
  %250 = vmatpush.msra.mxu0 0.0
  %251 = vmatpush.msra.mxu0 0.0
  %252 = vmatpush.msra.mxu0 0.0
  %253 = vmatpush.msra.mxu0 %v204
  %254 = vmatmul.f32.gmra.mxu0 %v216
  %v255 = vpop.f32.mrf.mxu0
  %v256 = vadd.f32 %v212, %v255
  %257 = vdwg.mxu0
  %258 = vmatpush.msra.mxu0 0.0
  %259 = vmatpush.msra.mxu0 0.0
  %260 = vmatpush.msra.mxu0 0.0
  %261 = vmatpush.msra.mxu0 0.0
  %262 = vmatpush.msra.mxu0 0.0
  %263 = vmatpush.msra.mxu0 0.0
  %264 = vmatpush.msra.mxu0 0.0
  %265 = vmatpush.msra.mxu0 0.0
  %266 = vmatpush.msra.mxu0 0.0
  %267 = vmatpush.msra.mxu0 0.0
  %268 = vmatpush.msra.mxu0 0.0
  %269 = vmatpush.msra.mxu0 0.0
  %270 = vmatpush.msra.mxu0 0.0
  %271 = vmatpush.msra.mxu0 0.0
  %272 = vmatpush.msra.mxu0 0.0
  %273 = vmatpush.msra.mxu0 %v205
  %274 = vmatmul.f32.gmra.mxu0 %v216
  %v275 = vpop.f32.mrf.mxu0
  %v276 = vadd.f32 %v212, %v275
  %277 = vdwg.mxu0
  %278 = vmatpush.msra.mxu0 0.0
  %279 = vmatpush.msra.mxu0 0.0
  %280 = vmatpush.msra.mxu0 0.0
  %281 = vmatpush.msra.mxu0 0.0
  %282 = vmatpush.msra.mxu0 0.0
  %283 = vmatpush.msra.mxu0 0.0
  %284 = vmatpush.msra.mxu0 0.0
  %285 = vmatpush.msra.mxu0 0.0
  %286 = vmatpush.msra.mxu0 0.0
  %287 = vmatpush.msra.mxu0 0.0
  %288 = vmatpush.msra.mxu0 0.0
  %289 = vmatpush.msra.mxu0 0.0
  %290 = vmatpush.msra.mxu0 0.0
  %291 = vmatpush.msra.mxu0 0.0
  %292 = vmatpush.msra.mxu0 0.0
  %293 = vmatpush.msra.mxu0 %v206
  %294 = vmatmul.f32.gmra.mxu0 %v216
  %v295 = vpop.f32.mrf.mxu0
  %v296 = vadd.f32 %v212, %v295
  %297 = vdwg.mxu0
  %298 = vst [vmem:[%s5] sm:$0xff] %v236
  %299 = vst [vmem:[%s5 + $0x8] sm:$0xff] %v256
  %300 = vst [vmem:[%s5 + $0x10] sm:$0xff] %v276
  %301 = vst [vmem:[%s5 + $0x18] sm:$0xff] %v296
  // Predicated region
  $region22: #{model_forward.1} parent=0 // pred_check
    _
  $region23: #{model_forward.1} parent=0 // pred_check_branch
    %303 = sbr.rel (0) target = $region25
  $region24: #{model_forward.1} parent=0 // pred_region
    _
  $region25: #{model_forward.1} parent=0 // pred_fallthru
    _
  // Predicated region
  $region26: #{model_forward.1} parent=0 // pred_check
    _
  $region27: #{model_forward.1} parent=0 // pred_check_branch
    %305 = sbr.rel (0) target = $region29
  $region28: #{model_forward.1} parent=0 // pred_region
    _
  $region29: #{model_forward.1} parent=0 // pred_fallthru
    _

</llo_original>
